<compile_context>
chip_gen: v7x
topology: tpu7x:2x2x1
jax: 0.10.0
libtpu: 0.0.40
codegen_flags: <defaults>
</compile_context>

<pallas_src>
import functools
import math

import jax
import jax.numpy as jnp
from jax.experimental import pallas as pl
from jax.experimental.pallas import tpu as pltpu


def _look_back_kernel(
    x_ref,     # (1, Lq, E)  f32   queries / residual for this batch item
    wav_ref,   # (1, Lk, E)  bf16  key/value source
    bias_ref,  # (1, 1, Lk)  f32   key-padding additive bias (0 allowed, -1e30 padded)
    wq_ref,    # (E, E)      bf16  query projection (scale folded in)
    wkv_ref,   # (E, 2E)     bf16  fused key|value projection
    bq_ref,    # (1, E)      f32   query bias (pre-scaled)
    bkv_ref,   # (1, 2E)     f32   key|value bias
    wo_ref,    # (E, E)      bf16  output projection
    vec_ref,   # (3, E)      f32   rows: out-proj bias, ln weight, ln bias
    o_ref,     # (1, Lq, E)  f32
    *,
    num_heads: int,
):
    f32 = jnp.float32
    bf16 = jnp.bfloat16
    Lq, E = x_ref.shape[1], x_ref.shape[2]
    H = num_heads
    D = E // H

    x = x_ref[0]                     # (Lq, E) f32, kept for the residual
    wav = wav_ref[0]                 # (Lk, E) bf16

    # ---- fused, lane-dense input projections (whole-E contractions on the MXU).
    q = jnp.dot(x.astype(bf16), wq_ref[...],
                preferred_element_type=f32) + bq_ref[...]          # (Lq, E)
    kv = jnp.dot(wav, wkv_ref[...],
                 preferred_element_type=f32) + bkv_ref[...]        # (Lk, 2E)

    # ---- split heads (layout only: lane slices + leading-axis stack, no extra MXU work).
    qh = jnp.stack([q[:, h * D:(h + 1) * D] for h in range(H)], axis=0).astype(bf16)
    kh = jnp.stack([kv[:, h * D:(h + 1) * D] for h in range(H)], axis=0).astype(bf16)
    vh = jnp.stack([kv[:, E + h * D:E + (h + 1) * D] for h in range(H)], axis=0).astype(bf16)

    # ---- head-batched attention core: one QK^T, one softmax, one PV.
    s = jnp.einsum("hqd,hkd->hqk", qh, kh, preferred_element_type=f32)   # (H, Lq, Lk)
    s = s + bias_ref[...]            # (1, 1, Lk) broadcasts over heads & queries
    # TODO(synk): a fully-padded key row yields a uniform softmax over this batch item's
    # keys instead of PyTorch's NaN output; zero such rows explicitly if they can occur.
    s = s - jnp.max(s, axis=-1, keepdims=True)
    p = jnp.exp(s)
    p = p * pl.reciprocal(jnp.sum(p, axis=-1, keepdims=True), approx=True)
    ctx = jnp.einsum("hqk,hkd->hqd", p.astype(bf16), vh,
                     preferred_element_type=f32)                         # (H, Lq, D)

    # ---- output projection: single full-E-contraction (Lq, E)@(E, E) matmul.
    ctx_cat = jnp.concatenate([ctx[h] for h in range(H)], axis=-1)       # (Lq, E) f32
    out = jnp.dot(ctx_cat.astype(bf16), wo_ref[...], preferred_element_type=f32)
    out = out + vec_ref[0:1, :]                                          # out-proj bias

    # ---- residual + LayerNorm (eps = 1e-5), all in f32.
    y = out + x
    mu = jnp.mean(y, axis=-1, keepdims=True)
    var = jnp.mean(jnp.square(y - mu), axis=-1, keepdims=True)
    y = (y - mu) * jax.lax.rsqrt(var + 1e-5)
    o_ref[0] = y * vec_ref[1:2, :] + vec_ref[2:3, :]


def look_back_forward(x, wav_feature, key_padding_mask, params, *, num_heads):
    """x: (B, Lq, E) f32, wav_feature: (B, Lk, E) f32, key_padding_mask: (B, Lk) bool."""
    B, Lq, E = x.shape
    _, Lk, _ = wav_feature.shape
    assert E % num_heads == 0
    H = num_heads
    D = E // H
    scale = 1.0 / math.sqrt(D)

    # ---- host-side parameter prep (free: fused into the surrounding XLA program).
    # Lane-dense layouts: (E, E) for q / out-proj, (E, 2E) for the fused k|v projection.
    wq = (params["wq"] * scale).T.astype(jnp.bfloat16)                           # (E, E)
    wkv = jnp.concatenate([params["wk"].T, params["wv"].T], axis=1
                          ).astype(jnp.bfloat16)                                 # (E, 2E)
    wo = params["wo"].T.astype(jnp.bfloat16)                                     # (E, E)
    bq = (params["bq"] * scale).reshape(1, E).astype(jnp.float32)                # (1, E)
    bkv = jnp.concatenate([params["bk"], params["bv"]]
                          ).reshape(1, 2 * E).astype(jnp.float32)                # (1, 2E)
    vec3 = jnp.stack([params["bo"], params["ln_w"], params["ln_b"]], axis=0
                     ).astype(jnp.float32)                                       # (3, E)

    # Tiny per-batch key-padding bias: (B, 1, Lk) f32 — NOT a (B*Lq, B*Lk) matrix.
    bias = jnp.where(key_padding_mask[:, None, :],
                     jnp.float32(-1e30), jnp.float32(0.0))

    x_f32 = x.astype(jnp.float32)
    wav_bf = wav_feature.astype(jnp.bfloat16)   # matmul-only operand -> bf16 HBM reads

    kernel = functools.partial(_look_back_kernel, num_heads=H)

    out = pl.pallas_call(
        kernel,
        out_shape=jax.ShapeDtypeStruct((B, Lq, E), jnp.float32),
        grid=(B,),
        in_specs=[
            pl.BlockSpec((1, Lq, E), lambda b: (b, 0, 0)),   # x: one batch item / step
            pl.BlockSpec((1, Lk, E), lambda b: (b, 0, 0)),   # wav_feature
            pl.BlockSpec((1, 1, Lk), lambda b: (b, 0, 0)),   # key-padding bias
            pl.BlockSpec((E, E), lambda b: (0, 0)),          # wq  (grid-invariant)
            pl.BlockSpec((E, 2 * E), lambda b: (0, 0)),      # wkv (grid-invariant)
            pl.BlockSpec((1, E), lambda b: (0, 0)),          # bq
            pl.BlockSpec((1, 2 * E), lambda b: (0, 0)),      # bkv
            pl.BlockSpec((E, E), lambda b: (0, 0)),          # wo
            pl.BlockSpec((3, E), lambda b: (0, 0)),          # bo / ln_w / ln_b
        ],
        out_specs=pl.BlockSpec((1, Lq, E), lambda b: (b, 0, 0)),
        compiler_params=pltpu.CompilerParams(
            dimension_semantics=("parallel",),
        ),
    )(x_f32, wav_bf, bias, wq, wkv, bq, bkv, wo, vec3)

    return out


def init_params(key, hidden_size):
    """Deterministic synthetic parameters matching nn.MultiheadAttention + LayerNorm."""
    E = hidden_size
    keys = jax.random.split(key, 10)
    s = 1.0 / math.sqrt(E)
    return {
        "wq": jax.random.uniform(keys[0], (E, E), jnp.float32, -s, s),
        "wk": jax.random.uniform(keys[1], (E, E), jnp.float32, -s, s),
        "wv": jax.random.uniform(keys[2], (E, E), jnp.float32, -s, s),
        "bq": jax.random.uniform(keys[3], (E,), jnp.float32, -s, s),
        "bk": jax.random.uniform(keys[4], (E,), jnp.float32, -s, s),
        "bv": jax.random.uniform(keys[5], (E,), jnp.float32, -s, s),
        "wo": jax.random.uniform(keys[6], (E, E), jnp.float32, -s, s),
        "bo": jax.random.uniform(keys[7], (E,), jnp.float32, -s, s),
        "ln_w": jnp.ones((E,), jnp.float32)
        + 0.1 * jax.random.normal(keys[8], (E,), jnp.float32),
        "ln_b": 0.1 * jax.random.normal(keys[9], (E,), jnp.float32),
    }


if __name__ == "__main__":
    # Small shapes consistent with the module: hidden=32, heads=4.
    B, Lq, Lk, E, H = 2, 8, 16, 32, 4

    root = jax.random.PRNGKey(0)
    k_x, k_wav, k_param = jax.random.split(root, 3)

    x = jax.random.normal(k_x, (B, Lq, E), jnp.float32)
    wav_feature = jax.random.normal(k_wav, (B, Lk, E), jnp.float32)
    # key_padding_mask: True = padded key position (last few keys of batch 1).
    kpm = jnp.zeros((B, Lk), jnp.bool_).at[1, Lk - 4:].set(True)

    params = init_params(k_param, E)

    # TODO(synk): attention dropout (p=0.1) is a no-op in eval mode and is omitted.
    fwd = jax.jit(functools.partial(look_back_forward, num_heads=H))
    out = jax.block_until_ready(fwd(x, wav_feature, kpm, params))
    assert out.shape == (B, Lq, E) and bool(jnp.all(jnp.isfinite(out)))
    print("KERNEL_OK")
</pallas_src>

<mosaic_0001>
module attributes {stable_mosaic.version = 11 : i64} {
  func.func @_look_back_kernel(%arg0: i32, %arg1: memref<1x8x32xf32, #tpu.memory_space<vmem>>, %arg2: memref<1x16x32xbf16, #tpu.memory_space<vmem>>, %arg3: memref<1x1x16xf32, #tpu.memory_space<vmem>>, %arg4: memref<32x32xbf16, #tpu.memory_space<vmem>>, %arg5: memref<32x64xbf16, #tpu.memory_space<vmem>>, %arg6: memref<1x32xf32, #tpu.memory_space<vmem>>, %arg7: memref<1x64xf32, #tpu.memory_space<vmem>>, %arg8: memref<32x32xbf16, #tpu.memory_space<vmem>>, %arg9: memref<3x32xf32, #tpu.memory_space<vmem>>, %arg10: memref<1x8x32xf32, #tpu.memory_space<vmem>>) attributes {dimension_semantics = [#tpu.dimension_semantics<parallel>], iteration_bounds = array<i64: 2>, scalar_prefetch = 0 : i64, scratch_operands = 0 : i64, tpu.core_type = #tpu.core_type<tc>, window_params = [{transform_indices = @transform_0, window_bounds = array<i64: 1, 8, 32>}, {transform_indices = @transform_1, window_bounds = array<i64: 1, 16, 32>}, {transform_indices = @transform_2, window_bounds = array<i64: 1, 1, 16>}, {pipeline_mode = #tpu.pipeline_mode<synchronous>, transform_indices = @transform_3, window_bounds = array<i64: 32, 32>}, {pipeline_mode = #tpu.pipeline_mode<synchronous>, transform_indices = @transform_4, window_bounds = array<i64: 32, 64>}, {pipeline_mode = #tpu.pipeline_mode<synchronous>, transform_indices = @transform_5, window_bounds = array<i64: 1, 32>}, {pipeline_mode = #tpu.pipeline_mode<synchronous>, transform_indices = @transform_6, window_bounds = array<i64: 1, 64>}, {pipeline_mode = #tpu.pipeline_mode<synchronous>, transform_indices = @transform_7, window_bounds = array<i64: 32, 32>}, {pipeline_mode = #tpu.pipeline_mode<synchronous>, transform_indices = @transform_8, window_bounds = array<i64: 3, 32>}, {transform_indices = @transform_9, window_bounds = array<i64: 1, 8, 32>}]} {
    %c0 = arith.constant 0 : index
    %c0_0 = arith.constant 0 : index
    %c0_1 = arith.constant 0 : index
    %0 = vector.load %arg1[%c0, %c0_0, %c0_1] : memref<1x8x32xf32, #tpu.memory_space<vmem>>, vector<1x8x32xf32>
    %1 = vector.shape_cast %0 : vector<1x8x32xf32> to vector<8x32xf32>
    %c0_2 = arith.constant 0 : index
    %c0_3 = arith.constant 0 : index
    %c0_4 = arith.constant 0 : index
    %2 = vector.load %arg2[%c0_2, %c0_3, %c0_4] : memref<1x16x32xbf16, #tpu.memory_space<vmem>>, vector<1x16x32xbf16>
    %3 = vector.shape_cast %2 : vector<1x16x32xbf16> to vector<16x32xbf16>
    %4 = arith.truncf %1 : vector<8x32xf32> to vector<8x32xbf16>
    %c0_5 = arith.constant 0 : index
    %c0_6 = arith.constant 0 : index
    %5 = vector.load %arg4[%c0_5, %c0_6] : memref<32x32xbf16, #tpu.memory_space<vmem>>, vector<32x32xbf16>
    %cst = arith.constant dense<0.000000e+00> : vector<8x32xf32>
    %6 = tpu.matmul %4, %5, %cst {dimension_numbers = #tpu.dot_dimension_numbers<[1], [0], [0], [1], [0, 0, 1, 1], [], []>} : vector<8x32xbf16>, vector<32x32xbf16>, vector<8x32xf32> -> vector<8x32xf32>
    %c0_7 = arith.constant 0 : index
    %c0_8 = arith.constant 0 : index
    %7 = vector.load %arg6[%c0_7, %c0_8] : memref<1x32xf32, #tpu.memory_space<vmem>>, vector<1x32xf32>
    %8 = vector.broadcast %7 : vector<1x32xf32> to vector<8x32xf32>
    %9 = arith.addf %6, %8 : vector<8x32xf32>
    %c0_9 = arith.constant 0 : index
    %c0_10 = arith.constant 0 : index
    %10 = vector.load %arg5[%c0_9, %c0_10] : memref<32x64xbf16, #tpu.memory_space<vmem>>, vector<32x64xbf16>
    %cst_11 = arith.constant dense<0.000000e+00> : vector<16x64xf32>
    %11 = tpu.matmul %3, %10, %cst_11 {dimension_numbers = #tpu.dot_dimension_numbers<[1], [0], [0], [1], [0, 0, 1, 1], [], []>} : vector<16x32xbf16>, vector<32x64xbf16>, vector<16x64xf32> -> vector<16x64xf32>
    %c0_12 = arith.constant 0 : index
    %c0_13 = arith.constant 0 : index
    %12 = vector.load %arg7[%c0_12, %c0_13] : memref<1x64xf32, #tpu.memory_space<vmem>>, vector<1x64xf32>
    %13 = vector.broadcast %12 : vector<1x64xf32> to vector<16x64xf32>
    %14 = arith.addf %11, %13 : vector<16x64xf32>
    %15 = vector.extract_strided_slice %9 {offsets = [0, 0], sizes = [8, 8], strides = [1, 1]} : vector<8x32xf32> to vector<8x8xf32>
    %16 = vector.extract_strided_slice %9 {offsets = [0, 8], sizes = [8, 8], strides = [1, 1]} : vector<8x32xf32> to vector<8x8xf32>
    %17 = vector.extract_strided_slice %9 {offsets = [0, 16], sizes = [8, 8], strides = [1, 1]} : vector<8x32xf32> to vector<8x8xf32>
    %18 = vector.extract_strided_slice %9 {offsets = [0, 24], sizes = [8, 8], strides = [1, 1]} : vector<8x32xf32> to vector<8x8xf32>
    %19 = vector.shape_cast %15 : vector<8x8xf32> to vector<1x8x8xf32>
    %20 = vector.shape_cast %16 : vector<8x8xf32> to vector<1x8x8xf32>
    %21 = vector.shape_cast %17 : vector<8x8xf32> to vector<1x8x8xf32>
    %22 = vector.shape_cast %18 : vector<8x8xf32> to vector<1x8x8xf32>
    %23 = tpu.concatenate %19, %20, %21, %22 in 0 : vector<1x8x8xf32>, vector<1x8x8xf32>, vector<1x8x8xf32>, vector<1x8x8xf32> -> vector<4x8x8xf32>
    %24 = arith.truncf %23 : vector<4x8x8xf32> to vector<4x8x8xbf16>
    %25 = vector.extract_strided_slice %14 {offsets = [0, 0], sizes = [16, 8], strides = [1, 1]} : vector<16x64xf32> to vector<16x8xf32>
    %26 = vector.extract_strided_slice %14 {offsets = [0, 8], sizes = [16, 8], strides = [1, 1]} : vector<16x64xf32> to vector<16x8xf32>
    %27 = vector.extract_strided_slice %14 {offsets = [0, 16], sizes = [16, 8], strides = [1, 1]} : vector<16x64xf32> to vector<16x8xf32>
    %28 = vector.extract_strided_slice %14 {offsets = [0, 24], sizes = [16, 8], strides = [1, 1]} : vector<16x64xf32> to vector<16x8xf32>
    %29 = vector.shape_cast %25 : vector<16x8xf32> to vector<1x16x8xf32>
    %30 = vector.shape_cast %26 : vector<16x8xf32> to vector<1x16x8xf32>
    %31 = vector.shape_cast %27 : vector<16x8xf32> to vector<1x16x8xf32>
    %32 = vector.shape_cast %28 : vector<16x8xf32> to vector<1x16x8xf32>
    %33 = tpu.concatenate %29, %30, %31, %32 in 0 : vector<1x16x8xf32>, vector<1x16x8xf32>, vector<1x16x8xf32>, vector<1x16x8xf32> -> vector<4x16x8xf32>
    %34 = arith.truncf %33 : vector<4x16x8xf32> to vector<4x16x8xbf16>
    %35 = vector.extract_strided_slice %14 {offsets = [0, 32], sizes = [16, 8], strides = [1, 1]} : vector<16x64xf32> to vector<16x8xf32>
    %36 = vector.extract_strided_slice %14 {offsets = [0, 40], sizes = [16, 8], strides = [1, 1]} : vector<16x64xf32> to vector<16x8xf32>
    %37 = vector.extract_strided_slice %14 {offsets = [0, 48], sizes = [16, 8], strides = [1, 1]} : vector<16x64xf32> to vector<16x8xf32>
    %38 = vector.extract_strided_slice %14 {offsets = [0, 56], sizes = [16, 8], strides = [1, 1]} : vector<16x64xf32> to vector<16x8xf32>
    %39 = vector.shape_cast %35 : vector<16x8xf32> to vector<1x16x8xf32>
    %40 = vector.shape_cast %36 : vector<16x8xf32> to vector<1x16x8xf32>
    %41 = vector.shape_cast %37 : vector<16x8xf32> to vector<1x16x8xf32>
    %42 = vector.shape_cast %38 : vector<16x8xf32> to vector<1x16x8xf32>
    %43 = tpu.concatenate %39, %40, %41, %42 in 0 : vector<1x16x8xf32>, vector<1x16x8xf32>, vector<1x16x8xf32>, vector<1x16x8xf32> -> vector<4x16x8xf32>
    %44 = arith.truncf %43 : vector<4x16x8xf32> to vector<4x16x8xbf16>
    "tpu.trace_start"() <{level = 10 : i32, message = "hqd,hkd->hqk"}> : () -> ()
    %cst_14 = arith.constant dense<0.000000e+00> : vector<4x8x16xf32>
    %45 = tpu.matmul %24, %34, %cst_14 {dimension_numbers = #tpu.dot_dimension_numbers<[2], [2], [1], [1], [0, 0, 0, 1, 1, 1], [0], [0]>} : vector<4x8x8xbf16>, vector<4x16x8xbf16>, vector<4x8x16xf32> -> vector<4x8x16xf32>
    "tpu.trace_stop"() : () -> ()
    %c0_15 = arith.constant 0 : index
    %c0_16 = arith.constant 0 : index
    %c0_17 = arith.constant 0 : index
    %46 = vector.load %arg3[%c0_15, %c0_16, %c0_17] : memref<1x1x16xf32, #tpu.memory_space<vmem>>, vector<1x1x16xf32>
    %47 = vector.broadcast %46 : vector<1x1x16xf32> to vector<4x8x16xf32>
    %48 = arith.addf %45, %47 : vector<4x8x16xf32>
    %cst_18 = arith.constant dense<0xFF800000> : vector<4x8xf32>
    %49 = vector.multi_reduction <maximumf>, %48, %cst_18 [2] : vector<4x8x16xf32> to vector<4x8xf32>
    %50 = vector.shape_cast %49 : vector<4x8xf32> to vector<4x8x1xf32>
    %51 = vector.broadcast %50 : vector<4x8x1xf32> to vector<4x8x16xf32>
    %52 = arith.subf %48, %51 : vector<4x8x16xf32>
    %53 = math.exp %52 : vector<4x8x16xf32>
    %cst_19 = arith.constant dense<0.000000e+00> : vector<4x8xf32>
    %54 = vector.multi_reduction <add>, %53, %cst_19 [2] : vector<4x8x16xf32> to vector<4x8xf32>
    %55 = vector.shape_cast %54 : vector<4x8xf32> to vector<4x8x1xf32>
    %56 = tpu.reciprocal %55 {approx = true} : vector<4x8x1xf32> -> vector<4x8x1xf32>
    %57 = vector.broadcast %56 : vector<4x8x1xf32> to vector<4x8x16xf32>
    %58 = arith.mulf %53, %57 : vector<4x8x16xf32>
    %59 = arith.truncf %58 : vector<4x8x16xf32> to vector<4x8x16xbf16>
    "tpu.trace_start"() <{level = 10 : i32, message = "hqk,hkd->hqd"}> : () -> ()
    %cst_20 = arith.constant dense<0.000000e+00> : vector<4x8x8xf32>
    %60 = tpu.matmul %59, %44, %cst_20 {dimension_numbers = #tpu.dot_dimension_numbers<[2], [1], [1], [2], [0, 0, 0, 1, 1, 2], [0], [0]>} : vector<4x8x16xbf16>, vector<4x16x8xbf16>, vector<4x8x8xf32> -> vector<4x8x8xf32>
    "tpu.trace_stop"() : () -> ()
    %61 = vector.extract_strided_slice %60 {offsets = [0, 0, 0], sizes = [1, 8, 8], strides = [1, 1, 1]} : vector<4x8x8xf32> to vector<1x8x8xf32>
    %62 = vector.shape_cast %61 : vector<1x8x8xf32> to vector<8x8xf32>
    %63 = vector.extract_strided_slice %60 {offsets = [1, 0, 0], sizes = [1, 8, 8], strides = [1, 1, 1]} : vector<4x8x8xf32> to vector<1x8x8xf32>
    %64 = vector.shape_cast %63 : vector<1x8x8xf32> to vector<8x8xf32>
    %65 = vector.extract_strided_slice %60 {offsets = [2, 0, 0], sizes = [1, 8, 8], strides = [1, 1, 1]} : vector<4x8x8xf32> to vector<1x8x8xf32>
    %66 = vector.shape_cast %65 : vector<1x8x8xf32> to vector<8x8xf32>
    %67 = vector.extract_strided_slice %60 {offsets = [3, 0, 0], sizes = [1, 8, 8], strides = [1, 1, 1]} : vector<4x8x8xf32> to vector<1x8x8xf32>
    %68 = vector.shape_cast %67 : vector<1x8x8xf32> to vector<8x8xf32>
    %69 = tpu.concatenate %62, %64, %66, %68 in 1 : vector<8x8xf32>, vector<8x8xf32>, vector<8x8xf32>, vector<8x8xf32> -> vector<8x32xf32>
    %70 = arith.truncf %69 : vector<8x32xf32> to vector<8x32xbf16>
    %c0_21 = arith.constant 0 : index
    %c0_22 = arith.constant 0 : index
    %71 = vector.load %arg8[%c0_21, %c0_22] : memref<32x32xbf16, #tpu.memory_space<vmem>>, vector<32x32xbf16>
    %cst_23 = arith.constant dense<0.000000e+00> : vector<8x32xf32>
    %72 = tpu.matmul %70, %71, %cst_23 {dimension_numbers = #tpu.dot_dimension_numbers<[1], [0], [0], [1], [0, 0, 1, 1], [], []>} : vector<8x32xbf16>, vector<32x32xbf16>, vector<8x32xf32> -> vector<8x32xf32>
    %c0_24 = arith.constant 0 : index
    %c0_25 = arith.constant 0 : index
    %73 = vector.load %arg9[%c0_24, %c0_25] : memref<3x32xf32, #tpu.memory_space<vmem>>, vector<1x32xf32>
    %74 = vector.broadcast %73 : vector<1x32xf32> to vector<8x32xf32>
    %75 = arith.addf %72, %74 : vector<8x32xf32>
    %76 = arith.addf %75, %1 : vector<8x32xf32>
    %cst_26 = arith.constant dense<0.000000e+00> : vector<8xf32>
    %77 = vector.multi_reduction <add>, %76, %cst_26 [1] : vector<8x32xf32> to vector<8xf32>
    %78 = vector.shape_cast %77 : vector<8xf32> to vector<8x1xf32>
    %cst_27 = arith.constant 3.200000e+01 : f32
    %79 = vector.broadcast %cst_27 : f32 to vector<8x1xf32>
    %80 = arith.divf %78, %79 : vector<8x1xf32>
    %81 = vector.broadcast %80 : vector<8x1xf32> to vector<8x32xf32>
    %82 = arith.subf %76, %81 : vector<8x32xf32>
    %83 = arith.mulf %82, %82 : vector<8x32xf32>
    %cst_28 = arith.constant dense<0.000000e+00> : vector<8xf32>
    %84 = vector.multi_reduction <add>, %83, %cst_28 [1] : vector<8x32xf32> to vector<8xf32>
    %85 = vector.shape_cast %84 : vector<8xf32> to vector<8x1xf32>
    %cst_29 = arith.constant 3.200000e+01 : f32
    %86 = vector.broadcast %cst_29 : f32 to vector<8x1xf32>
    %87 = arith.divf %85, %86 : vector<8x1xf32>
    %88 = vector.broadcast %80 : vector<8x1xf32> to vector<8x32xf32>
    %89 = arith.subf %76, %88 : vector<8x32xf32>
    %cst_30 = arith.constant 9.99999974E-6 : f32
    %90 = vector.broadcast %cst_30 : f32 to vector<8x1xf32>
    %91 = arith.addf %87, %90 : vector<8x1xf32>
    %92 = math.rsqrt %91 : vector<8x1xf32>
    %93 = vector.broadcast %92 : vector<8x1xf32> to vector<8x32xf32>
    %94 = arith.mulf %89, %93 : vector<8x32xf32>
    %c1 = arith.constant 1 : index
    %c0_31 = arith.constant 0 : index
    %95 = vector.load %arg9[%c1, %c0_31] : memref<3x32xf32, #tpu.memory_space<vmem>>, vector<1x32xf32>
    %96 = vector.broadcast %95 : vector<1x32xf32> to vector<8x32xf32>
    %97 = arith.mulf %94, %96 : vector<8x32xf32>
    %c2 = arith.constant 2 : index
    %c0_32 = arith.constant 0 : index
    %98 = vector.load %arg9[%c2, %c0_32] : memref<3x32xf32, #tpu.memory_space<vmem>>, vector<1x32xf32>
    %99 = vector.broadcast %98 : vector<1x32xf32> to vector<8x32xf32>
    %100 = arith.addf %97, %99 : vector<8x32xf32>
    %c0_33 = arith.constant 0 : index
    %c0_34 = arith.constant 0 : index
    %c0_35 = arith.constant 0 : index
    %101 = vector.load %arg10[%c0_33, %c0_34, %c0_35] : memref<1x8x32xf32, #tpu.memory_space<vmem>>, vector<1x8x32xf32>
    %102 = vector.shape_cast %101 : vector<1x8x32xf32> to vector<8x32xf32>
    %103 = vector.shape_cast %100 : vector<8x32xf32> to vector<1x8x32xf32>
    tpu.vector_store %arg10[%c0_33, %c0_34, %c0_35], %103 {strides = array<i32>} : memref<1x8x32xf32, #tpu.memory_space<vmem>>, vector<1x8x32xf32>,
    return
  }
  func.func @transform_0(%arg0: i32) -> (i32, i32, i32) {
    %c0_i32 = arith.constant 0 : i32
    %c0_i32_0 = arith.constant 0 : i32
    %c0_i32_1 = arith.constant 0 : i32
    return %arg0, %c0_i32, %c0_i32_0 : i32, i32, i32
  }
  func.func @transform_1(%arg0: i32) -> (i32, i32, i32) {
    %c0_i32 = arith.constant 0 : i32
    %c0_i32_0 = arith.constant 0 : i32
    %c0_i32_1 = arith.constant 0 : i32
    return %arg0, %c0_i32, %c0_i32_0 : i32, i32, i32
  }
  func.func @transform_2(%arg0: i32) -> (i32, i32, i32) {
    %c0_i32 = arith.constant 0 : i32
    %c0_i32_0 = arith.constant 0 : i32
    %c0_i32_1 = arith.constant 0 : i32
    return %arg0, %c0_i32, %c0_i32_0 : i32, i32, i32
  }
  func.func @transform_3(%arg0: i32) -> (i32, i32) {
    %c0_i32 = arith.constant 0 : i32
    %c0_i32_0 = arith.constant 0 : i32
    %c0_i32_1 = arith.constant 0 : i32
    return %c0_i32, %c0_i32_0 : i32, i32
  }
  func.func @transform_4(%arg0: i32) -> (i32, i32) {
    %c0_i32 = arith.constant 0 : i32
    %c0_i32_0 = arith.constant 0 : i32
    %c0_i32_1 = arith.constant 0 : i32
    return %c0_i32, %c0_i32_0 : i32, i32
  }
  func.func @transform_5(%arg0: i32) -> (i32, i32) {
    %c0_i32 = arith.constant 0 : i32
    %c0_i32_0 = arith.constant 0 : i32
    %c0_i32_1 = arith.constant 0 : i32
    return %c0_i32, %c0_i32_0 : i32, i32
  }
  func.func @transform_6(%arg0: i32) -> (i32, i32) {
    %c0_i32 = arith.constant 0 : i32
    %c0_i32_0 = arith.constant 0 : i32
    %c0_i32_1 = arith.constant 0 : i32
    return %c0_i32, %c0_i32_0 : i32, i32
  }
  func.func @transform_7(%arg0: i32) -> (i32, i32) {
    %c0_i32 = arith.constant 0 : i32
    %c0_i32_0 = arith.constant 0 : i32
    %c0_i32_1 = arith.constant 0 : i32
    return %c0_i32, %c0_i32_0 : i32, i32
  }
  func.func @transform_8(%arg0: i32) -> (i32, i32) {
    %c0_i32 = arith.constant 0 : i32
    %c0_i32_0 = arith.constant 0 : i32
    %c0_i32_1 = arith.constant 0 : i32
    return %c0_i32, %c0_i32_0 : i32, i32
  }
  func.func @transform_9(%arg0: i32) -> (i32, i32, i32) {
    %c0_i32 = arith.constant 0 : i32
    %c0_i32_0 = arith.constant 0 : i32
    %c0_i32_1 = arith.constant 0 : i32
    return %arg0, %c0_i32, %c0_i32_0 : i32, i32, i32
  }
}

</mosaic_0001>

<llo_original>
// kernel: look_back_forward.1
$region0: #{look_back_forward.1}
  #allocation0 [shape = 'u32[]', space=smem, size = 0x4, offset = 0x4, fixed_abs, tag = 'smem constant byte address 0x4 - core index']
  #allocation1 [shape = 'u32[144,128]{1,0:T(1,128)}', space=vmem, size = 0x12000, scoped, tag = 'internal scratch']
  %s0 = inlined_call_operand.vmem [shape: f32[2,8,32], index: 0, kind: input, shape index: {}]
  %s1 = inlined_call_operand.vmem [shape: bf16[2,16,32], index: 1, kind: input, shape index: {}]
  %s2 = inlined_call_operand.vmem [shape: f32[2,1,16], index: 2, kind: input, shape index: {}]
  %s3 = inlined_call_operand.vmem [shape: bf16[32,32], index: 3, kind: input, shape index: {}]
  %s4 = inlined_call_operand.vmem [shape: bf16[32,64], index: 4, kind: input, shape index: {}]
  %s5 = inlined_call_operand.vmem [shape: f32[1,32], index: 5, kind: input, shape index: {}]
  %s6 = inlined_call_operand.vmem [shape: f32[1,64], index: 6, kind: input, shape index: {}]
  %s7 = inlined_call_operand.vmem [shape: bf16[32,32], index: 7, kind: input, shape index: {}]
  %s8 = inlined_call_operand.vmem [shape: f32[3,32], index: 8, kind: input, shape index: {}]
  %s9 = inlined_call_operand.hbm [shape: f32[2,8,32], index: 9, kind: output, shape index: {}]
  %s10 = sld [smem:[#allocation0]]
  $region69: #{look_back_forward.1} parent=0
    _
  %s12 = ssub.s32 1, %s10
  %s13 = scalar_select 0, %s12, %s10
  $region1: #{look_back_forward.1} parent=0
    #allocation2 [shape = 'u8[8192]{0}', space=vmem, size = 0x2000, scoped, tag = 'output window, operand 0']
    #allocation3 [shape = 's32[2]{0}', space=sflag, size = 0x8, scoped, tag = 'scoped memory for look_back_forward.1']
    %14 = vsyncpa [#allocation3], 0
    %s15 = scalar_lea.sflag [#allocation3], 1
    %16 = vsyncpa %s15, 0
    loop: start=0, step=1, limit=4
    $region2: #{look_back_forward.1} parent=1 // loop_pre_header
      _
    $region3: #{look_back_forward.1} parent=1 // loop_header
      %s18 = sphi 0, %s22
      %p19 = scmp.ge.s32.totalorder %s18, 4
      %s28 = sphi 0, %s30
      %s31 = sphi 0, %s28
      %s32 = sphi 0, %s31
      %s48 = sphi 0, %s32
      %s54 = sphi 0, %s56
      %s57 = sphi 0, %s54
      %s58 = sphi 0, %s57
      %s74 = sphi 0, %s58
      %s80 = sphi 0, %s82
      %s83 = sphi 0, %s80
      %s84 = sphi 0, %s83
      %s100 = sphi 0, %s84
      %s104 = sphi 0, %s104
      %s106 = sphi 0, %s104
      %s107 = sphi 0, %s106
      %s121 = sphi 0, %s107
      %s125 = sphi 0, %s125
      %s127 = sphi 0, %s125
      %s128 = sphi 0, %s127
      %s142 = sphi 0, %s128
      %s146 = sphi 0, %s146
      %s148 = sphi 0, %s146
      %s149 = sphi 0, %s148
      %s163 = sphi 0, %s149
      %s167 = sphi 0, %s167
      %s169 = sphi 0, %s167
      %s170 = sphi 0, %s169
      %s184 = sphi 0, %s170
      %s188 = sphi 0, %s188
      %s190 = sphi 0, %s188
      %s191 = sphi 0, %s190
      %s205 = sphi 0, %s191
      %s209 = sphi 0, %s209
      %s211 = sphi 0, %s209
      %s212 = sphi 0, %s211
      %s226 = sphi 0, %s212
      %s232 = sphi 0, %s234
      %s235 = sphi 0, %s232
      %s236 = sphi 0, %s235
      %s252 = sphi 0, %s236
    $region4: #{look_back_forward.1} parent=1 // loop_header_branch
      %21 = sbr.rel (%p19) target = $region8
    $region5: #{look_back_forward.1} parent=1 // loop_body
      %s23 = ssub.s32 %s18, 1
      %s24 = ssub.s32 %s18, 2
      %s25 = sadd.s32 %s18, 1
      %s26 = ssub.s32 %s18, %s25
      %p27 = scmp.eq.s32.totalorder %s26, 0
      %s29 = sadd.s32 %s28, 1
      %s30 = scalar_select %p27, %s28, %s29
      %p33 = pneg %p27
      %p34 = scmp.eq.s32.totalorder %s18, 1
      %p35 = por %p33, %p34
      %p36 = scmp.ne.s32.totalorder %s28, %s31
      %p37 = scmp.eq.s32.totalorder %s18, 0
      %p38 = por %p36, %p37
      %p39 = scmp.ne.s32.totalorder %s28, %s31
      %p40 = scmp.eq.s32.totalorder %s23, 1
      %p41 = por %p39, %p40
      %p42 = scmp.ne.s32.totalorder %s31, %s32
      %p43 = scmp.eq.s32.totalorder %s23, 0
      %p44 = por %p42, %p43
      %p45 = scmp.ne.s32.totalorder %s31, %s32
      %p46 = scmp.eq.s32.totalorder %s24, 1
      %p47 = por %p45, %p46
      %p49 = scmp.ne.s32.totalorder %s32, %s48
      %p50 = scmp.eq.s32.totalorder %s24, 0
      %p51 = por %p49, %p50
      %s52 = ssub.s32 %s18, %s25
      %p53 = scmp.eq.s32.totalorder %s52, 0
      %s55 = sadd.s32 %s54, 1
      %s56 = scalar_select %p53, %s54, %s55
      %p59 = pneg %p53
      %p60 = scmp.eq.s32.totalorder %s18, 1
      %p61 = por %p59, %p60
      %p62 = scmp.ne.s32.totalorder %s54, %s57
      %p63 = scmp.eq.s32.totalorder %s18, 0
      %p64 = por %p62, %p63
      %p65 = scmp.ne.s32.totalorder %s54, %s57
      %p66 = scmp.eq.s32.totalorder %s23, 1
      %p67 = por %p65, %p66
      %p68 = scmp.ne.s32.totalorder %s57, %s58
      %p69 = scmp.eq.s32.totalorder %s23, 0
      %p70 = por %p68, %p69
      %p71 = scmp.ne.s32.totalorder %s57, %s58
      %p72 = scmp.eq.s32.totalorder %s24, 1
      %p73 = por %p71, %p72
      %p75 = scmp.ne.s32.totalorder %s58, %s74
      %p76 = scmp.eq.s32.totalorder %s24, 0
      %p77 = por %p75, %p76
      %s78 = ssub.s32 %s18, %s25
      %p79 = scmp.eq.s32.totalorder %s78, 0
      %s81 = sadd.s32 %s80, 1
      %s82 = scalar_select %p79, %s80, %s81
      %p85 = pneg %p79
      %p86 = scmp.eq.s32.totalorder %s18, 1
      %p87 = por %p85, %p86
      %p88 = scmp.ne.s32.totalorder %s80, %s83
      %p89 = scmp.eq.s32.totalorder %s18, 0
      %p90 = por %p88, %p89
      %p91 = scmp.ne.s32.totalorder %s80, %s83
      %p92 = scmp.eq.s32.totalorder %s23, 1
      %p93 = por %p91, %p92
      %p94 = scmp.ne.s32.totalorder %s83, %s84
      %p95 = scmp.eq.s32.totalorder %s23, 0
      %p96 = por %p94, %p95
      %p97 = scmp.ne.s32.totalorder %s83, %s84
      %p98 = scmp.eq.s32.totalorder %s24, 1
      %p99 = por %p97, %p98
      %p101 = scmp.ne.s32.totalorder %s84, %s100
      %p102 = scmp.eq.s32.totalorder %s24, 0
      %p103 = por %p101, %p102
      %s105 = sadd.s32 %s104, 1
      %p108 = scmp.eq.s32.totalorder %s18, 1
      %p109 = scmp.ne.s32.totalorder %s104, %s106
      %p110 = scmp.eq.s32.totalorder %s18, 0
      %p111 = por %p109, %p110
      %p112 = scmp.ne.s32.totalorder %s104, %s106
      %p113 = scmp.eq.s32.totalorder %s23, 1
      %p114 = por %p112, %p113
      %p115 = scmp.ne.s32.totalorder %s106, %s107
      %p116 = scmp.eq.s32.totalorder %s23, 0
      %p117 = por %p115, %p116
      %p118 = scmp.ne.s32.totalorder %s106, %s107
      %p119 = scmp.eq.s32.totalorder %s24, 1
      %p120 = por %p118, %p119
      %p122 = scmp.ne.s32.totalorder %s107, %s121
      %p123 = scmp.eq.s32.totalorder %s24, 0
      %p124 = por %p122, %p123
      %s126 = sadd.s32 %s125, 1
      %p129 = scmp.eq.s32.totalorder %s18, 1
      %p130 = scmp.ne.s32.totalorder %s125, %s127
      %p131 = scmp.eq.s32.totalorder %s18, 0
      %p132 = por %p130, %p131
      %p133 = scmp.ne.s32.totalorder %s125, %s127
      %p134 = scmp.eq.s32.totalorder %s23, 1
      %p135 = por %p133, %p134
      %p136 = scmp.ne.s32.totalorder %s127, %s128
      %p137 = scmp.eq.s32.totalorder %s23, 0
      %p138 = por %p136, %p137
      %p139 = scmp.ne.s32.totalorder %s127, %s128
      %p140 = scmp.eq.s32.totalorder %s24, 1
      %p141 = por %p139, %p140
      %p143 = scmp.ne.s32.totalorder %s128, %s142
      %p144 = scmp.eq.s32.totalorder %s24, 0
      %p145 = por %p143, %p144
      %s147 = sadd.s32 %s146, 1
      %p150 = scmp.eq.s32.totalorder %s18, 1
      %p151 = scmp.ne.s32.totalorder %s146, %s148
      %p152 = scmp.eq.s32.totalorder %s18, 0
      %p153 = por %p151, %p152
      %p154 = scmp.ne.s32.totalorder %s146, %s148
      %p155 = scmp.eq.s32.totalorder %s23, 1
      %p156 = por %p154, %p155
      %p157 = scmp.ne.s32.totalorder %s148, %s149
      %p158 = scmp.eq.s32.totalorder %s23, 0
      %p159 = por %p157, %p158
      %p160 = scmp.ne.s32.totalorder %s148, %s149
      %p161 = scmp.eq.s32.totalorder %s24, 1
      %p162 = por %p160, %p161
      %p164 = scmp.ne.s32.totalorder %s149, %s163
      %p165 = scmp.eq.s32.totalorder %s24, 0
      %p166 = por %p164, %p165
      %s168 = sadd.s32 %s167, 1
      %p171 = scmp.eq.s32.totalorder %s18, 1
      %p172 = scmp.ne.s32.totalorder %s167, %s169
      %p173 = scmp.eq.s32.totalorder %s18, 0
      %p174 = por %p172, %p173
      %p175 = scmp.ne.s32.totalorder %s167, %s169
      %p176 = scmp.eq.s32.totalorder %s23, 1
      %p177 = por %p175, %p176
      %p178 = scmp.ne.s32.totalorder %s169, %s170
      %p179 = scmp.eq.s32.totalorder %s23, 0
      %p180 = por %p178, %p179
      %p181 = scmp.ne.s32.totalorder %s169, %s170
      %p182 = scmp.eq.s32.totalorder %s24, 1
      %p183 = por %p181, %p182
      %p185 = scmp.ne.s32.totalorder %s170, %s184
      %p186 = scmp.eq.s32.totalorder %s24, 0
      %p187 = por %p185, %p186
      %s189 = sadd.s32 %s188, 1
      %p192 = scmp.eq.s32.totalorder %s18, 1
      %p193 = scmp.ne.s32.totalorder %s188, %s190
      %p194 = scmp.eq.s32.totalorder %s18, 0
      %p195 = por %p193, %p194
      %p196 = scmp.ne.s32.totalorder %s188, %s190
      %p197 = scmp.eq.s32.totalorder %s23, 1
      %p198 = por %p196, %p197
      %p199 = scmp.ne.s32.totalorder %s190, %s191
      %p200 = scmp.eq.s32.totalorder %s23, 0
      %p201 = por %p199, %p200
      %p202 = scmp.ne.s32.totalorder %s190, %s191
      %p203 = scmp.eq.s32.totalorder %s24, 1
      %p204 = por %p202, %p203
      %p206 = scmp.ne.s32.totalorder %s191, %s205
      %p207 = scmp.eq.s32.totalorder %s24, 0
      %p208 = por %p206, %p207
      %s210 = sadd.s32 %s209, 1
      %p213 = scmp.eq.s32.totalorder %s18, 1
      %p214 = scmp.ne.s32.totalorder %s209, %s211
      %p215 = scmp.eq.s32.totalorder %s18, 0
      %p216 = por %p214, %p215
      %p217 = scmp.ne.s32.totalorder %s209, %s211
      %p218 = scmp.eq.s32.totalorder %s23, 1
      %p219 = por %p217, %p218
      %p220 = scmp.ne.s32.totalorder %s211, %s212
      %p221 = scmp.eq.s32.totalorder %s23, 0
      %p222 = por %p220, %p221
      %p223 = scmp.ne.s32.totalorder %s211, %s212
      %p224 = scmp.eq.s32.totalorder %s24, 1
      %p225 = por %p223, %p224
      %p227 = scmp.ne.s32.totalorder %s212, %s226
      %p228 = scmp.eq.s32.totalorder %s24, 0
      %p229 = por %p227, %p228
      %s230 = ssub.s32 %s18, %s25
      %p231 = scmp.eq.s32.totalorder %s230, 0
      %s233 = sadd.s32 %s232, 1
      %s234 = scalar_select %p231, %s232, %s233
      %p237 = pneg %p231
      %p238 = scmp.eq.s32.totalorder %s18, 1
      %p239 = por %p237, %p238
      %p240 = scmp.ne.s32.totalorder %s232, %s235
      %p241 = scmp.eq.s32.totalorder %s18, 0
      %p242 = por %p240, %p241
      %p243 = scmp.ne.s32.totalorder %s232, %s235
      %p244 = scmp.eq.s32.totalorder %s23, 1
      %p245 = por %p243, %p244
      %p246 = scmp.ne.s32.totalorder %s235, %s236
      %p247 = scmp.eq.s32.totalorder %s23, 0
      %p248 = por %p246, %p247
      %p249 = scmp.ne.s32.totalorder %s235, %s236
      %p250 = scmp.eq.s32.totalorder %s24, 1
      %p251 = por %p249, %p250
      %p253 = scmp.ne.s32.totalorder %s236, %s252
      %p254 = scmp.eq.s32.totalorder %s24, 0
      %p255 = por %p253, %p254
      %p256 = scmp.le.s32.totalorder 1, %s18
      %p257 = scmp.lt.s32.totalorder %s18, 3
      %p258 = pnand %p256, %p257
      %p259 = pneg %p258
      // Predicated region
      $region9: #{look_back_forward.1} parent=5 // pred_check
        _
      $region10: #{look_back_forward.1} parent=5 // pred_check_branch
        %261 = sbr.rel (%p258) target = $region12
      $region11: #{look_back_forward.1} parent=5 // pred_region
        %s262 = ssub.s32 %s18, 1
        // Predicated region
        $region13: #{look_back_forward.1} parent=11 // pred_check
          %p263 = pneg %p117
        $region14: #{look_back_forward.1} parent=11 // pred_check_branch
          %265 = sbr.rel (%p263) target = $region16
        $region15: #{look_back_forward.1} parent=11 // pred_region
          _
        $region16: #{look_back_forward.1} parent=11 // pred_fallthru
          _
        // Predicated region
        $region17: #{look_back_forward.1} parent=11 // pred_check
          %p266 = pneg %p138
        $region18: #{look_back_forward.1} parent=11 // pred_check_branch
          %268 = sbr.rel (%p266) target = $region20
        $region19: #{look_back_forward.1} parent=11 // pred_region
          _
        $region20: #{look_back_forward.1} parent=11 // pred_fallthru
          _
        // Predicated region
        $region21: #{look_back_forward.1} parent=11 // pred_check
          %p269 = pneg %p159
        $region22: #{look_back_forward.1} parent=11 // pred_check_branch
          %271 = sbr.rel (%p269) target = $region24
        $region23: #{look_back_forward.1} parent=11 // pred_region
          _
        $region24: #{look_back_forward.1} parent=11 // pred_fallthru
          _
        // Predicated region
        $region25: #{look_back_forward.1} parent=11 // pred_check
          %p272 = pneg %p180
        $region26: #{look_back_forward.1} parent=11 // pred_check_branch
          %274 = sbr.rel (%p272) target = $region28
        $region27: #{look_back_forward.1} parent=11 // pred_region
          _
        $region28: #{look_back_forward.1} parent=11 // pred_fallthru
          _
        // Predicated region
        $region29: #{look_back_forward.1} parent=11 // pred_check
          %p275 = pneg %p201
        $region30: #{look_back_forward.1} parent=11 // pred_check_branch
          %277 = sbr.rel (%p275) target = $region32
        $region31: #{look_back_forward.1} parent=11 // pred_region
          _
        $region32: #{look_back_forward.1} parent=11 // pred_fallthru
          _
        // Predicated region
        $region33: #{look_back_forward.1} parent=11 // pred_check
          %p278 = pneg %p222
        $region34: #{look_back_forward.1} parent=11 // pred_check_branch
          %280 = sbr.rel (%p278) target = $region36
        $region35: #{look_back_forward.1} parent=11 // pred_region
          _
        $region36: #{look_back_forward.1} parent=11 // pred_fallthru
          _
      $region12: #{look_back_forward.1} parent=5 // pred_fallthru
        _
      %p281 = scmp.lt.s32.totalorder %s18, 2
      // Predicated region
      $region37: #{look_back_forward.1} parent=5 // pred_check
        %p282 = pneg %p281
      $region38: #{look_back_forward.1} parent=5 // pred_check_branch
        %284 = sbr.rel (%p282) target = $region40
      $region39: #{look_back_forward.1} parent=5 // pred_region
        // Predicated region
        $region41: #{look_back_forward.1} parent=39 // pred_check
          %p285 = pneg %p38
        $region42: #{look_back_forward.1} parent=39 // pred_check_branch
          %287 = sbr.rel (%p285) target = $region44
        $region43: #{look_back_forward.1} parent=39 // pred_region
          %p288 = scmp.lt.s32.totalorder %s18, 1
          %s289 = scalar_select %p288, %s18, 1
          %s290 = smul.addr %s289, 8
          %s291 = scalar_lea.vmem %s0, %s290
        $region44: #{look_back_forward.1} parent=39 // pred_fallthru
          _
        // Predicated region
        $region45: #{look_back_forward.1} parent=39 // pred_check
          %p292 = pneg %p64
        $region46: #{look_back_forward.1} parent=39 // pred_check_branch
          %294 = sbr.rel (%p292) target = $region48
        $region47: #{look_back_forward.1} parent=39 // pred_region
          %p295 = scmp.lt.s32.totalorder %s18, 1
          %s296 = scalar_select %p295, %s18, 1
          %s297 = smul.addr %s296, 2
          %s298 = smul.addr %s297, 4
          %s299 = scalar_lea.vmem %s1, %s298
        $region48: #{look_back_forward.1} parent=39 // pred_fallthru
          _
        // Predicated region
        $region49: #{look_back_forward.1} parent=39 // pred_check
          %p300 = pneg %p90
        $region50: #{look_back_forward.1} parent=39 // pred_check_branch
          %302 = sbr.rel (%p300) target = $region52
        $region51: #{look_back_forward.1} parent=39 // pred_region
          %p303 = scmp.lt.s32.totalorder %s18, 1
          %s304 = scalar_select %p303, %s18, 1
          %s305 = scalar_lea.vmem %s2, %s304
        $region52: #{look_back_forward.1} parent=39 // pred_fallthru
          _
      $region40: #{look_back_forward.1} parent=5 // pred_fallthru
        _
      %p306 = scmp.le.s32.totalorder 1, %s18
      %p307 = scmp.lt.s32.totalorder %s18, 3
      %p308 = pnand %p306, %p307
      %p309 = pneg %p308
      // Predicated region
      $region53: #{look_back_forward.1} parent=5 // pred_check
        _
      $region54: #{look_back_forward.1} parent=5 // pred_check_branch
        %311 = sbr.rel (%p308) target = $region56
      $region55: #{look_back_forward.1} parent=5 // pred_region
        %s312 = ssub.s32 %s18, 1
        %p313 = scmp.lt.s32.totalorder %s23, 1
        %s314 = scalar_select %p313, %s23, 1
        %s315 = smul.addr %s314, 8
        %s316 = scalar_lea.vmem %s0, %s315
        %p317 = pneg %p44
        %p318 = pneg %p41
        %p319 = scmp.lt.s32.totalorder %s23, 1
        %s320 = scalar_select %p319, %s23, 1
        %s321 = smul.addr %s320, 2
        %s322 = smul.addr %s321, 4
        %s323 = scalar_lea.vmem %s1, %s322
        %p324 = pneg %p70
        %p325 = pneg %p67
        %p326 = scmp.lt.s32.totalorder %s23, 1
        %s327 = scalar_select %p326, %s23, 1
        %s328 = scalar_lea.vmem %s2, %s327
        %p329 = pneg %p96
        %p330 = pneg %p93
        %p331 = pneg %p117
        %p332 = pneg %p114
        %p333 = pneg %p138
        %p334 = pneg %p135
        %p335 = pneg %p159
        %p336 = pneg %p156
        %p337 = pneg %p180
        %p338 = pneg %p177
        %p339 = pneg %p201
        %p340 = pneg %p198
        %p341 = pneg %p222
        %p342 = pneg %p219
        %p343 = pneg %p248
        %p344 = pneg %p245
        %s345 = sand.u32 %s235, 1
        %s346 = scalar_lea.sflag [#allocation3], %s345
        %s347 = sand.u32 %s235, 1
        %s348 = smul.addr %s347, 8
        %s349 = scalar_lea.vmem [#allocation2], %s348
        %p350 = scmp.lt.s32.totalorder %s23, 1
        %s351 = scalar_select %p350, %s23, 1
        %s352 = smul.addr %s351, 8
        %s353 = scalar_lea.vmem %s0, %s352
        %p354 = scmp.lt.s32.totalorder %s23, 1
        %s355 = scalar_select %p354, %s23, 1
        %s356 = smul.addr %s355, 2
        %s357 = smul.addr %s356, 4
        %s358 = scalar_lea.vmem %s1, %s357
        %p359 = scmp.lt.s32.totalorder %s23, 1
        %s360 = scalar_select %p359, %s23, 1
        %s361 = scalar_lea.vmem %s2, %s360
        %v363 = vld [vmem:[%s353] sm:$0xff]
        %v364 = vld [vmem:[%s358] sm:$0xf]
        %v365 = vld [vmem:[%s358 + $0x4] sm:$0xf]
        %v366 = vpack.c.bf16 %v363, %v363
        %v367 = vld [vmem:[%s3] sm:$0xf]
        %v368 = vld [vmem:[%s3 + $0x4] sm:$0xf]
        %v369 = vld [vmem:[%s3 + $0x8] sm:$0xf]
        %v370 = vld [vmem:[%s3 + $0xc] sm:$0xf]
        %v371 = vld [vmem:[%s5] sm:$0x1]
        %v373 = vlaneseq
        %v374 = vshrl.u32 %v373, 7
        %v375 = vsub.s32 0, %v374
        %v376 = vrot.slane %v371, %v375
        %v382 = vunpack.c.l.b16 %v367
        %v383 = vunpack.c.l.b16 %v368
        %v384 = vunpack.c.l.b16 %v369
        %v385 = vunpack.c.l.b16 %v370
        %v386 = vpack.c.b16 %v383, %v382
        %v387 = vpack.c.b16 %v385, %v384
        %vm390 = vcmask 261120
        %v392 = vsel %vm390, %v366, 0
        %394 = vmatprep.subr.bf16.mxu0 0
        %395 = vmatpush1.bf16.msra.mxu0 %v386
        %396 = vmatprep.subr.bf16.mxu0 0
        %397 = vmatpush1.bf16.msra.mxu0 %v387
        %398 = vmatprep.subr.bf16.mxu0 0
        %399 = vmatpush1.bf16.msra.mxu0 0
        %400 = vmatprep.subr.bf16.mxu0 0
        %401 = vmatpush1.bf16.msra.mxu0 0
        %402 = vmatprep.subr.bf16.mxu0 0
        %403 = vmatpush1.bf16.msra.mxu0 0
        %404 = vmatprep.subr.bf16.mxu0 0
        %405 = vmatpush1.bf16.msra.mxu0 0
        %406 = vmatprep.subr.bf16.mxu0 0
        %407 = vmatpush1.bf16.msra.mxu0 0
        %408 = vmatprep.subr.bf16.mxu0 0
        %409 = vmatpush1.bf16.msra.mxu0 0
        %410 = vmatprep.subr.bf16.mxu0 0
        %411 = vmatpush1.bf16.msra.mxu0 0
        %412 = vmatprep.subr.bf16.mxu0 0
        %413 = vmatpush1.bf16.msra.mxu0 0
        %414 = vmatprep.subr.bf16.mxu0 0
        %415 = vmatpush1.bf16.msra.mxu0 0
        %416 = vmatprep.subr.bf16.mxu0 0
        %417 = vmatpush1.bf16.msra.mxu0 0
        %418 = vmatprep.subr.bf16.mxu0 0
        %419 = vmatpush1.bf16.msra.mxu0 0
        %420 = vmatprep.subr.bf16.mxu0 0
        %421 = vmatpush1.bf16.msra.mxu0 0
        %422 = vmatprep.subr.bf16.mxu0 0
        %423 = vmatpush1.bf16.msra.mxu0 0
        %424 = vmatprep.subr.bf16.mxu0 0
        %425 = vmatpush1.bf16.msra.mxu0 0
        %426 = vmatprep.mubr.bf16.mxu0 0
        %427 = vmatmul.mubr.bf16.gmra.mrb[0].mxu0 %v392
        %v428 = vpop.f32.mrb[0].mxu0
        %v429 = vadd.f32 %v376, %v428
        %v430 = vpop.f32.mrb[0].mxu0
        %v431 = vpop.f32.mrb[0].mxu0
        %v432 = vpop.f32.mrb[0].mxu0
        %433 = vdwg.mxu0
        %v434 = vld [vmem:[%s4] sm:$0xf]
        %v435 = vld [vmem:[%s4 + $0x4] sm:$0xf]
        %v436 = vld [vmem:[%s4 + $0x8] sm:$0xf]
        %v437 = vld [vmem:[%s4 + $0xc] sm:$0xf]
        %v438 = vld [vmem:[%s6] sm:$0x1]
        %v440 = vlaneseq
        %v441 = vshrl.u32 %v440, 7
        %v442 = vsub.s32 0, %v441
        %v443 = vrot.slane %v438, %v442
        %v447 = vunpack.c.l.b16 %v364
        %v448 = vunpack.c.l.b16 %v365
        %v449 = vpack.c.b16 %v448, %v447
        %v454 = vunpack.c.l.b16 %v434
        %v455 = vunpack.c.l.b16 %v435
        %v456 = vunpack.c.l.b16 %v436
        %v457 = vunpack.c.l.b16 %v437
        %v458 = vpack.c.b16 %v455, %v454
        %v459 = vpack.c.b16 %v457, %v456
        %v463 = vsel %vm390, %v449, 0
        %465 = vmatprep.subr.bf16.mxu0 0
        %466 = vmatpush1.bf16.msra.mxu0 %v458
        %467 = vmatprep.subr.bf16.mxu0 0
        %468 = vmatpush1.bf16.msra.mxu0 %v459
        %469 = vmatprep.subr.bf16.mxu0 0
        %470 = vmatpush1.bf16.msra.mxu0 0
        %471 = vmatprep.subr.bf16.mxu0 0
        %472 = vmatpush1.bf16.msra.mxu0 0
        %473 = vmatprep.subr.bf16.mxu0 0
        %474 = vmatpush1.bf16.msra.mxu0 0
        %475 = vmatprep.subr.bf16.mxu0 0
        %476 = vmatpush1.bf16.msra.mxu0 0
        %477 = vmatprep.subr.bf16.mxu0 0
        %478 = vmatpush1.bf16.msra.mxu0 0
        %479 = vmatprep.subr.bf16.mxu0 0
        %480 = vmatpush1.bf16.msra.mxu0 0
        %481 = vmatprep.subr.bf16.mxu0 0
        %482 = vmatpush1.bf16.msra.mxu0 0
        %483 = vmatprep.subr.bf16.mxu0 0
        %484 = vmatpush1.bf16.msra.mxu0 0
        %485 = vmatprep.subr.bf16.mxu0 0
        %486 = vmatpush1.bf16.msra.mxu0 0
        %487 = vmatprep.subr.bf16.mxu0 0
        %488 = vmatpush1.bf16.msra.mxu0 0
        %489 = vmatprep.subr.bf16.mxu0 0
        %490 = vmatpush1.bf16.msra.mxu0 0
        %491 = vmatprep.subr.bf16.mxu0 0
        %492 = vmatpush1.bf16.msra.mxu0 0
        %493 = vmatprep.subr.bf16.mxu0 0
        %494 = vmatpush1.bf16.msra.mxu0 0
        %495 = vmatprep.subr.bf16.mxu0 0
        %496 = vmatpush1.bf16.msra.mxu0 0
        %497 = vmatprep.mubr.bf16.mxu0 0
        %498 = vmatmul.mubr.bf16.gmra.mrb[0].mxu0 %v463
        %v499 = vpop.f32.mrb[0].mxu0
        %v500 = vadd.f32 %v443, %v499
        %v501 = vpop.f32.mrb[0].mxu0
        %v502 = vpop.f32.mrb[0].mxu0
        %v503 = vadd.f32 %v443, %v502
        %v504 = vpop.f32.mrb[0].mxu0
        %505 = vdwg.mxu0
        %507 = vrot.lane.b32.xlu0 %v429, 120
        %v508 = vpop.permute.xlu0 %507
        %510 = vrot.lane.b32.xlu0 %v429, 112
        %v511 = vpop.permute.xlu0 %510
        %513 = vrot.lane.b32.xlu0 %v429, 104
        %v514 = vpop.permute.xlu0 %513
        %v516 = vpack.c.bf16 %v429, %v429
        %v517 = vpack.c.bf16 %v508, %v508
        %v518 = vpack.c.bf16 %v511, %v511
        %v519 = vpack.c.bf16 %v514, %v514
        %522 = vrot.lane.b32.xlu0 %v500, 120
        %v523 = vpop.permute.xlu0 %522
        %524 = vrot.lane.b32.xlu0 %v503, 120
        %v525 = vpop.permute.xlu0 %524
        %528 = vrot.lane.b32.xlu0 %v500, 112
        %v529 = vpop.permute.xlu0 %528
        %530 = vrot.lane.b32.xlu0 %v503, 112
        %v531 = vpop.permute.xlu0 %530
        %534 = vrot.lane.b32.xlu0 %v500, 104
        %v535 = vpop.permute.xlu0 %534
        %536 = vrot.lane.b32.xlu0 %v503, 104
        %v537 = vpop.permute.xlu0 %536
        %v540 = vpack.c.bf16 %v503, %v500
        %v541 = vpack.c.bf16 %v525, %v523
        %v542 = vpack.c.bf16 %v531, %v529
        %v543 = vpack.c.bf16 %v537, %v535
        %v544 = vld [vmem:[%s361] sm:$0x1]
        %v546 = vlaneseq
        %v547 = vshrl.u32 %v546, 7
        %v548 = vsub.s32 0, %v547
        %v549 = vrot.slane %v544, %v548
        %vm551 = vcmask 64512
        %v553 = vsel %vm551, %v516, 0
        %v556 = vsel %vm551, %v540, 0
        %558 = vmatprep.subr.bf16.mxu0 0
        %559 = vmatpush1.bf16.xpose.msra.mxu0 %v556
        %560 = vmatprep.subr.bf16.mxu0 0
        %561 = vmatpush1.bf16.xpose.msra.mxu0 0
        %562 = vmatprep.subr.bf16.mxu0 0
        %563 = vmatpush1.bf16.xpose.msra.mxu0 0
        %564 = vmatprep.subr.bf16.mxu0 0
        %565 = vmatpush1.bf16.xpose.msra.mxu0 0
        %566 = vmatprep.subr.bf16.mxu0 0
        %567 = vmatpush1.bf16.xpose.msra.mxu0 0
        %568 = vmatprep.subr.bf16.mxu0 0
        %569 = vmatpush1.bf16.xpose.msra.mxu0 0
        %570 = vmatprep.subr.bf16.mxu0 0
        %571 = vmatpush1.bf16.xpose.msra.mxu0 0
        %572 = vmatprep.subr.bf16.mxu0 0
        %573 = vmatpush1.bf16.xpose.msra.mxu0 0
        %574 = vmatprep.subr.bf16.mxu0 0
        %575 = vmatpush1.bf16.xpose.msra.mxu0 0
        %576 = vmatprep.subr.bf16.mxu0 0
        %577 = vmatpush1.bf16.xpose.msra.mxu0 0
        %578 = vmatprep.subr.bf16.mxu0 0
        %579 = vmatpush1.bf16.xpose.msra.mxu0 0
        %580 = vmatprep.subr.bf16.mxu0 0
        %581 = vmatpush1.bf16.xpose.msra.mxu0 0
        %582 = vmatprep.subr.bf16.mxu0 0
        %583 = vmatpush1.bf16.xpose.msra.mxu0 0
        %584 = vmatprep.subr.bf16.mxu0 0
        %585 = vmatpush1.bf16.xpose.msra.mxu0 0
        %586 = vmatprep.subr.bf16.mxu0 0
        %587 = vmatpush1.bf16.xpose.msra.mxu0 0
        %588 = vmatprep.subr.bf16.mxu0 0
        %589 = vmatpush1.bf16.xpose.msra.mxu0 0
        %590 = vmatprep.mubr.bf16.mxu0 0
        %591 = vmatmul.mubr.bf16.gmra.mrb[0].mxu0 %v553
        %v592 = vpop.f32.mrb[0].mxu0
        %v593 = vadd.f32 %v549, %v592
        %v594 = vpop.f32.mrb[0].mxu0
        %v595 = vpop.f32.mrb[0].mxu0
        %v596 = vpop.f32.mrb[0].mxu0
        %597 = vdwg.mxu0
        %v599 = vsel %vm551, %v517, 0
        %v602 = vsel %vm551, %v541, 0
        %604 = vmatprep.subr.bf16.mxu0 0
        %605 = vmatpush1.bf16.xpose.msra.mxu0 %v602
        %606 = vmatprep.subr.bf16.mxu0 0
        %607 = vmatpush1.bf16.xpose.msra.mxu0 0
        %608 = vmatprep.subr.bf16.mxu0 0
        %609 = vmatpush1.bf16.xpose.msra.mxu0 0
        %610 = vmatprep.subr.bf16.mxu0 0
        %611 = vmatpush1.bf16.xpose.msra.mxu0 0
        %612 = vmatprep.subr.bf16.mxu0 0
        %613 = vmatpush1.bf16.xpose.msra.mxu0 0
        %614 = vmatprep.subr.bf16.mxu0 0
        %615 = vmatpush1.bf16.xpose.msra.mxu0 0
        %616 = vmatprep.subr.bf16.mxu0 0
        %617 = vmatpush1.bf16.xpose.msra.mxu0 0
        %618 = vmatprep.subr.bf16.mxu0 0
        %619 = vmatpush1.bf16.xpose.msra.mxu0 0
        %620 = vmatprep.subr.bf16.mxu0 0
        %621 = vmatpush1.bf16.xpose.msra.mxu0 0
        %622 = vmatprep.subr.bf16.mxu0 0
        %623 = vmatpush1.bf16.xpose.msra.mxu0 0
        %624 = vmatprep.subr.bf16.mxu0 0
        %625 = vmatpush1.bf16.xpose.msra.mxu0 0
        %626 = vmatprep.subr.bf16.mxu0 0
        %627 = vmatpush1.bf16.xpose.msra.mxu0 0
        %628 = vmatprep.subr.bf16.mxu0 0
        %629 = vmatpush1.bf16.xpose.msra.mxu0 0
        %630 = vmatprep.subr.bf16.mxu0 0
        %631 = vmatpush1.bf16.xpose.msra.mxu0 0
        %632 = vmatprep.subr.bf16.mxu0 0
        %633 = vmatpush1.bf16.xpose.msra.mxu0 0
        %634 = vmatprep.subr.bf16.mxu0 0
        %635 = vmatpush1.bf16.xpose.msra.mxu0 0
        %636 = vmatprep.mubr.bf16.mxu0 0
        %637 = vmatmul.mubr.bf16.gmra.mrb[0].mxu0 %v599
        %v638 = vpop.f32.mrb[0].mxu0
        %v639 = vadd.f32 %v549, %v638
        %v640 = vpop.f32.mrb[0].mxu0
        %v641 = vpop.f32.mrb[0].mxu0
        %v642 = vpop.f32.mrb[0].mxu0
        %643 = vdwg.mxu0
        %v645 = vsel %vm551, %v518, 0
        %v648 = vsel %vm551, %v542, 0
        %650 = vmatprep.subr.bf16.mxu0 0
        %651 = vmatpush1.bf16.xpose.msra.mxu0 %v648
        %652 = vmatprep.subr.bf16.mxu0 0
        %653 = vmatpush1.bf16.xpose.msra.mxu0 0
        %654 = vmatprep.subr.bf16.mxu0 0
        %655 = vmatpush1.bf16.xpose.msra.mxu0 0
        %656 = vmatprep.subr.bf16.mxu0 0
        %657 = vmatpush1.bf16.xpose.msra.mxu0 0
        %658 = vmatprep.subr.bf16.mxu0 0
        %659 = vmatpush1.bf16.xpose.msra.mxu0 0
        %660 = vmatprep.subr.bf16.mxu0 0
        %661 = vmatpush1.bf16.xpose.msra.mxu0 0
        %662 = vmatprep.subr.bf16.mxu0 0
        %663 = vmatpush1.bf16.xpose.msra.mxu0 0
        %664 = vmatprep.subr.bf16.mxu0 0
        %665 = vmatpush1.bf16.xpose.msra.mxu0 0
        %666 = vmatprep.subr.bf16.mxu0 0
        %667 = vmatpush1.bf16.xpose.msra.mxu0 0
        %668 = vmatprep.subr.bf16.mxu0 0
        %669 = vmatpush1.bf16.xpose.msra.mxu0 0
        %670 = vmatprep.subr.bf16.mxu0 0
        %671 = vmatpush1.bf16.xpose.msra.mxu0 0
        %672 = vmatprep.subr.bf16.mxu0 0
        %673 = vmatpush1.bf16.xpose.msra.mxu0 0
        %674 = vmatprep.subr.bf16.mxu0 0
        %675 = vmatpush1.bf16.xpose.msra.mxu0 0
        %676 = vmatprep.subr.bf16.mxu0 0
        %677 = vmatpush1.bf16.xpose.msra.mxu0 0
        %678 = vmatprep.subr.bf16.mxu0 0
        %679 = vmatpush1.bf16.xpose.msra.mxu0 0
        %680 = vmatprep.subr.bf16.mxu0 0
        %681 = vmatpush1.bf16.xpose.msra.mxu0 0
        %682 = vmatprep.mubr.bf16.mxu0 0
        %683 = vmatmul.mubr.bf16.gmra.mrb[0].mxu0 %v645
        %v684 = vpop.f32.mrb[0].mxu0
        %v685 = vadd.f32 %v549, %v684
        %v686 = vpop.f32.mrb[0].mxu0
        %v687 = vpop.f32.mrb[0].mxu0
        %v688 = vpop.f32.mrb[0].mxu0
        %689 = vdwg.mxu0
        %v691 = vsel %vm551, %v519, 0
        %v694 = vsel %vm551, %v543, 0
        %696 = vmatprep.subr.bf16.mxu0 0
        %697 = vmatpush1.bf16.xpose.msra.mxu0 %v694
        %698 = vmatprep.subr.bf16.mxu0 0
        %699 = vmatpush1.bf16.xpose.msra.mxu0 0
        %700 = vmatprep.subr.bf16.mxu0 0
        %701 = vmatpush1.bf16.xpose.msra.mxu0 0
        %702 = vmatprep.subr.bf16.mxu0 0
        %703 = vmatpush1.bf16.xpose.msra.mxu0 0
        %704 = vmatprep.subr.bf16.mxu0 0
        %705 = vmatpush1.bf16.xpose.msra.mxu0 0
        %706 = vmatprep.subr.bf16.mxu0 0
        %707 = vmatpush1.bf16.xpose.msra.mxu0 0
        %708 = vmatprep.subr.bf16.mxu0 0
        %709 = vmatpush1.bf16.xpose.msra.mxu0 0
        %710 = vmatprep.subr.bf16.mxu0 0
        %711 = vmatpush1.bf16.xpose.msra.mxu0 0
        %712 = vmatprep.subr.bf16.mxu0 0
        %713 = vmatpush1.bf16.xpose.msra.mxu0 0
        %714 = vmatprep.subr.bf16.mxu0 0
        %715 = vmatpush1.bf16.xpose.msra.mxu0 0
        %716 = vmatprep.subr.bf16.mxu0 0
        %717 = vmatpush1.bf16.xpose.msra.mxu0 0
        %718 = vmatprep.subr.bf16.mxu0 0
        %719 = vmatpush1.bf16.xpose.msra.mxu0 0
        %720 = vmatprep.subr.bf16.mxu0 0
        %721 = vmatpush1.bf16.xpose.msra.mxu0 0
        %722 = vmatprep.subr.bf16.mxu0 0
        %723 = vmatpush1.bf16.xpose.msra.mxu0 0
        %724 = vmatprep.subr.bf16.mxu0 0
        %725 = vmatpush1.bf16.xpose.msra.mxu0 0
        %726 = vmatprep.subr.bf16.mxu0 0
        %727 = vmatpush1.bf16.xpose.msra.mxu0 0
        %728 = vmatprep.mubr.bf16.mxu0 0
        %729 = vmatmul.mubr.bf16.gmra.mrb[0].mxu0 %v691
        %v730 = vpop.f32.mrb[0].mxu0
        %v731 = vadd.f32 %v549, %v730
        %v732 = vpop.f32.mrb[0].mxu0
        %v733 = vpop.f32.mrb[0].mxu0
        %v734 = vpop.f32.mrb[0].mxu0
        %735 = vdwg.mxu0
        %vm736 = vcmask 130048
        %v737 = vsel %vm736, %v593, -inf
        %738 = vmax.xlane.f32.xlu0 %v737
        %v739 = vpop.xlane.xlu0 %738
        %v740 = vsel %vm736, %v639, -inf
        %741 = vmax.xlane.f32.xlu0 %v740
        %v742 = vpop.xlane.xlu0 %741
        %v743 = vsel %vm736, %v685, -inf
        %744 = vmax.xlane.f32.xlu0 %v743
        %v745 = vpop.xlane.xlu0 %744
        %v746 = vsel %vm736, %v731, -inf
        %747 = vmax.xlane.f32.xlu0 %v746
        %v748 = vpop.xlane.xlu0 %747
        %v749 = vsub.f32 %v593, %v739
        %v750 = vsub.f32 %v639, %v742
        %v751 = vsub.f32 %v685, %v745
        %v752 = vsub.f32 %v731, %v748
        %v753 = vmul.f32 %v749, 1.442695
        %v754 = vpow.pop %v753
        %v755 = vmul.f32 %v750, 1.442695
        %v756 = vpow.pop %v755
        %v757 = vmul.f32 %v751, 1.442695
        %v758 = vpow.pop %v757
        %v759 = vmul.f32 %v752, 1.442695
        %v760 = vpow.pop %v759
        %v761 = vsel %vm736, %v754, 0.0
        %762 = vadd.xlane.f32.xlu0 %v761
        %v763 = vpop.xlane.xlu0 %762
        %v764 = vsel %vm736, %v756, 0.0
        %765 = vadd.xlane.f32.xlu0 %v764
        %v766 = vpop.xlane.xlu0 %765
        %v767 = vsel %vm736, %v758, 0.0
        %768 = vadd.xlane.f32.xlu0 %v767
        %v769 = vpop.xlane.xlu0 %768
        %v770 = vsel %vm736, %v760, 0.0
        %771 = vadd.xlane.f32.xlu0 %v770
        %v772 = vpop.xlane.xlu0 %771
        %v773 = vrcp.pop %v763
        %v774 = vrcp.pop %v766
        %v775 = vrcp.pop %v769
        %v776 = vrcp.pop %v772
        %v777 = vmul.f32 %v754, %v773
        %v778 = vmul.f32 %v756, %v774
        %v779 = vmul.f32 %v758, %v775
        %v780 = vmul.f32 %v760, %v776
        %v781 = vpack.c.bf16 %v777, %v777
        %v782 = vpack.c.bf16 %v778, %v778
        %v783 = vpack.c.bf16 %v779, %v779
        %v784 = vpack.c.bf16 %v780, %v780
        %786 = vrot.lane.b32.xlu0 %v540, 96
        %v787 = vpop.permute.xlu0 %786
        %v790 = vsel %vm736, %v781, 0
        %792 = vmatprep.subr.bf16.mxu0 0
        %793 = vmatpush1.bf16.msra.mxu0 %v787
        %794 = vmatprep.subr.bf16.mxu0 0
        %795 = vmatpush1.bf16.msra.mxu0 0
        %796 = vmatprep.subr.bf16.mxu0 0
        %797 = vmatpush1.bf16.msra.mxu0 0
        %798 = vmatprep.subr.bf16.mxu0 0
        %799 = vmatpush1.bf16.msra.mxu0 0
        %800 = vmatprep.subr.bf16.mxu0 0
        %801 = vmatpush1.bf16.msra.mxu0 0
        %802 = vmatprep.subr.bf16.mxu0 0
        %803 = vmatpush1.bf16.msra.mxu0 0
        %804 = vmatprep.subr.bf16.mxu0 0
        %805 = vmatpush1.bf16.msra.mxu0 0
        %806 = vmatprep.subr.bf16.mxu0 0
        %807 = vmatpush1.bf16.msra.mxu0 0
        %808 = vmatprep.subr.bf16.mxu0 0
        %809 = vmatpush1.bf16.msra.mxu0 0
        %810 = vmatprep.subr.bf16.mxu0 0
        %811 = vmatpush1.bf16.msra.mxu0 0
        %812 = vmatprep.subr.bf16.mxu0 0
        %813 = vmatpush1.bf16.msra.mxu0 0
        %814 = vmatprep.subr.bf16.mxu0 0
        %815 = vmatpush1.bf16.msra.mxu0 0
        %816 = vmatprep.subr.bf16.mxu0 0
        %817 = vmatpush1.bf16.msra.mxu0 0
        %818 = vmatprep.subr.bf16.mxu0 0
        %819 = vmatpush1.bf16.msra.mxu0 0
        %820 = vmatprep.subr.bf16.mxu0 0
        %821 = vmatpush1.bf16.msra.mxu0 0
        %822 = vmatprep.subr.bf16.mxu0 0
        %823 = vmatpush1.bf16.msra.mxu0 0
        %824 = vmatprep.mubr.bf16.mxu0 0
        %825 = vmatmul.mubr.bf16.gmra.mrb[0].mxu0 %v790
        %v826 = vpop.f32.mrb[0].mxu0
        %v827 = vadd.f32 0.0, %v826
        %v828 = vpop.f32.mrb[0].mxu0
        %v829 = vpop.f32.mrb[0].mxu0
        %v830 = vpop.f32.mrb[0].mxu0
        %831 = vdwg.mxu0
        %833 = vrot.lane.b32.xlu0 %v541, 96
        %v834 = vpop.permute.xlu0 %833
        %v837 = vsel %vm736, %v782, 0
        %839 = vmatprep.subr.bf16.mxu0 0
        %840 = vmatpush1.bf16.msra.mxu0 %v834
        %841 = vmatprep.subr.bf16.mxu0 0
        %842 = vmatpush1.bf16.msra.mxu0 0
        %843 = vmatprep.subr.bf16.mxu0 0
        %844 = vmatpush1.bf16.msra.mxu0 0
        %845 = vmatprep.subr.bf16.mxu0 0
        %846 = vmatpush1.bf16.msra.mxu0 0
        %847 = vmatprep.subr.bf16.mxu0 0
        %848 = vmatpush1.bf16.msra.mxu0 0
        %849 = vmatprep.subr.bf16.mxu0 0
        %850 = vmatpush1.bf16.msra.mxu0 0
        %851 = vmatprep.subr.bf16.mxu0 0
        %852 = vmatpush1.bf16.msra.mxu0 0
        %853 = vmatprep.subr.bf16.mxu0 0
        %854 = vmatpush1.bf16.msra.mxu0 0
        %855 = vmatprep.subr.bf16.mxu0 0
        %856 = vmatpush1.bf16.msra.mxu0 0
        %857 = vmatprep.subr.bf16.mxu0 0
        %858 = vmatpush1.bf16.msra.mxu0 0
        %859 = vmatprep.subr.bf16.mxu0 0
        %860 = vmatpush1.bf16.msra.mxu0 0
        %861 = vmatprep.subr.bf16.mxu0 0
        %862 = vmatpush1.bf16.msra.mxu0 0
        %863 = vmatprep.subr.bf16.mxu0 0
        %864 = vmatpush1.bf16.msra.mxu0 0
        %865 = vmatprep.subr.bf16.mxu0 0
        %866 = vmatpush1.bf16.msra.mxu0 0
        %867 = vmatprep.subr.bf16.mxu0 0
        %868 = vmatpush1.bf16.msra.mxu0 0
        %869 = vmatprep.subr.bf16.mxu0 0
        %870 = vmatpush1.bf16.msra.mxu0 0
        %871 = vmatprep.mubr.bf16.mxu0 0
        %872 = vmatmul.mubr.bf16.gmra.mrb[0].mxu0 %v837
        %v873 = vpop.f32.mrb[0].mxu0
        %v874 = vadd.f32 0.0, %v873
        %v875 = vpop.f32.mrb[0].mxu0
        %v876 = vpop.f32.mrb[0].mxu0
        %v877 = vpop.f32.mrb[0].mxu0
        %878 = vdwg.mxu0
        %880 = vrot.lane.b32.xlu0 %v542, 96
        %v881 = vpop.permute.xlu0 %880
        %v884 = vsel %vm736, %v783, 0
        %886 = vmatprep.subr.bf16.mxu0 0
        %887 = vmatpush1.bf16.msra.mxu0 %v881
        %888 = vmatprep.subr.bf16.mxu0 0
        %889 = vmatpush1.bf16.msra.mxu0 0
        %890 = vmatprep.subr.bf16.mxu0 0
        %891 = vmatpush1.bf16.msra.mxu0 0
        %892 = vmatprep.subr.bf16.mxu0 0
        %893 = vmatpush1.bf16.msra.mxu0 0
        %894 = vmatprep.subr.bf16.mxu0 0
        %895 = vmatpush1.bf16.msra.mxu0 0
        %896 = vmatprep.subr.bf16.mxu0 0
        %897 = vmatpush1.bf16.msra.mxu0 0
        %898 = vmatprep.subr.bf16.mxu0 0
        %899 = vmatpush1.bf16.msra.mxu0 0
        %900 = vmatprep.subr.bf16.mxu0 0
        %901 = vmatpush1.bf16.msra.mxu0 0
        %902 = vmatprep.subr.bf16.mxu0 0
        %903 = vmatpush1.bf16.msra.mxu0 0
        %904 = vmatprep.subr.bf16.mxu0 0
        %905 = vmatpush1.bf16.msra.mxu0 0
        %906 = vmatprep.subr.bf16.mxu0 0
        %907 = vmatpush1.bf16.msra.mxu0 0
        %908 = vmatprep.subr.bf16.mxu0 0
        %909 = vmatpush1.bf16.msra.mxu0 0
        %910 = vmatprep.subr.bf16.mxu0 0
        %911 = vmatpush1.bf16.msra.mxu0 0
        %912 = vmatprep.subr.bf16.mxu0 0
        %913 = vmatpush1.bf16.msra.mxu0 0
        %914 = vmatprep.subr.bf16.mxu0 0
        %915 = vmatpush1.bf16.msra.mxu0 0
        %916 = vmatprep.subr.bf16.mxu0 0
        %917 = vmatpush1.bf16.msra.mxu0 0
        %918 = vmatprep.mubr.bf16.mxu0 0
        %919 = vmatmul.mubr.bf16.gmra.mrb[0].mxu0 %v884
        %v920 = vpop.f32.mrb[0].mxu0
        %v921 = vadd.f32 0.0, %v920
        %v922 = vpop.f32.mrb[0].mxu0
        %v923 = vpop.f32.mrb[0].mxu0
        %v924 = vpop.f32.mrb[0].mxu0
        %925 = vdwg.mxu0
        %927 = vrot.lane.b32.xlu0 %v543, 96
        %v928 = vpop.permute.xlu0 %927
        %v931 = vsel %vm736, %v784, 0
        %933 = vmatprep.subr.bf16.mxu0 0
        %934 = vmatpush1.bf16.msra.mxu0 %v928
        %935 = vmatprep.subr.bf16.mxu0 0
        %936 = vmatpush1.bf16.msra.mxu0 0
        %937 = vmatprep.subr.bf16.mxu0 0
        %938 = vmatpush1.bf16.msra.mxu0 0
        %939 = vmatprep.subr.bf16.mxu0 0
        %940 = vmatpush1.bf16.msra.mxu0 0
        %941 = vmatprep.subr.bf16.mxu0 0
        %942 = vmatpush1.bf16.msra.mxu0 0
        %943 = vmatprep.subr.bf16.mxu0 0
        %944 = vmatpush1.bf16.msra.mxu0 0
        %945 = vmatprep.subr.bf16.mxu0 0
        %946 = vmatpush1.bf16.msra.mxu0 0
        %947 = vmatprep.subr.bf16.mxu0 0
        %948 = vmatpush1.bf16.msra.mxu0 0
        %949 = vmatprep.subr.bf16.mxu0 0
        %950 = vmatpush1.bf16.msra.mxu0 0
        %951 = vmatprep.subr.bf16.mxu0 0
        %952 = vmatpush1.bf16.msra.mxu0 0
        %953 = vmatprep.subr.bf16.mxu0 0
        %954 = vmatpush1.bf16.msra.mxu0 0
        %955 = vmatprep.subr.bf16.mxu0 0
        %956 = vmatpush1.bf16.msra.mxu0 0
        %957 = vmatprep.subr.bf16.mxu0 0
        %958 = vmatpush1.bf16.msra.mxu0 0
        %959 = vmatprep.subr.bf16.mxu0 0
        %960 = vmatpush1.bf16.msra.mxu0 0
        %961 = vmatprep.subr.bf16.mxu0 0
        %962 = vmatpush1.bf16.msra.mxu0 0
        %963 = vmatprep.subr.bf16.mxu0 0
        %964 = vmatpush1.bf16.msra.mxu0 0
        %965 = vmatprep.mubr.bf16.mxu0 0
        %966 = vmatmul.mubr.bf16.gmra.mrb[0].mxu0 %v931
        %v967 = vpop.f32.mrb[0].mxu0
        %v968 = vadd.f32 0.0, %v967
        %v969 = vpop.f32.mrb[0].mxu0
        %v970 = vpop.f32.mrb[0].mxu0
        %v971 = vpop.f32.mrb[0].mxu0
        %972 = vdwg.mxu0
        %974 = vrot.lane.b32.xlu0 %v874, 8
        %v975 = vpop.permute.xlu0 %974
        %978 = vrot.lane.b32.xlu0 %v921, 16
        %v979 = vpop.permute.xlu0 %978
        %982 = vrot.lane.b32.xlu0 %v968, 24
        %v983 = vpop.permute.xlu0 %982
        %v985 = vsel %vm551, %v827, %v975
        %v986 = vsel %vm736, %v985, %v979
        %vm987 = vcmask 195584
        %v988 = vsel %vm987, %v986, %v983
        %v989 = vpack.c.bf16 %v988, %v988
        %v990 = vld [vmem:[%s7] sm:$0xf]
        %v991 = vld [vmem:[%s7 + $0x4] sm:$0xf]
        %v992 = vld [vmem:[%s7 + $0x8] sm:$0xf]
        %v993 = vld [vmem:[%s7 + $0xc] sm:$0xf]
        %v994 = vld [vmem:[%s8] sm:$0x1]
        %v995 = vlaneseq
        %v996 = vshrl.u32 %v995, 7
        %v997 = vsub.s32 0, %v996
        %v998 = vrot.slane %v994, %v997
        %v1003 = vunpack.c.l.b16 %v990
        %v1004 = vunpack.c.l.b16 %v991
        %v1005 = vunpack.c.l.b16 %v992
        %v1006 = vunpack.c.l.b16 %v993
        %v1007 = vpack.c.b16 %v1004, %v1003
        %v1008 = vpack.c.b16 %v1006, %v1005
        %v1012 = vsel %vm390, %v989, 0
        %1014 = vmatprep.subr.bf16.mxu0 0
        %1015 = vmatpush1.bf16.msra.mxu0 %v1007
        %1016 = vmatprep.subr.bf16.mxu0 0
        %1017 = vmatpush1.bf16.msra.mxu0 %v1008
        %1018 = vmatprep.subr.bf16.mxu0 0
        %1019 = vmatpush1.bf16.msra.mxu0 0
        %1020 = vmatprep.subr.bf16.mxu0 0
        %1021 = vmatpush1.bf16.msra.mxu0 0
        %1022 = vmatprep.subr.bf16.mxu0 0
        %1023 = vmatpush1.bf16.msra.mxu0 0
        %1024 = vmatprep.subr.bf16.mxu0 0
        %1025 = vmatpush1.bf16.msra.mxu0 0
        %1026 = vmatprep.subr.bf16.mxu0 0
        %1027 = vmatpush1.bf16.msra.mxu0 0
        %1028 = vmatprep.subr.bf16.mxu0 0
        %1029 = vmatpush1.bf16.msra.mxu0 0
        %1030 = vmatprep.subr.bf16.mxu0 0
        %1031 = vmatpush1.bf16.msra.mxu0 0
        %1032 = vmatprep.subr.bf16.mxu0 0
        %1033 = vmatpush1.bf16.msra.mxu0 0
        %1034 = vmatprep.subr.bf16.mxu0 0
        %1035 = vmatpush1.bf16.msra.mxu0 0
        %1036 = vmatprep.subr.bf16.mxu0 0
        %1037 = vmatpush1.bf16.msra.mxu0 0
        %1038 = vmatprep.subr.bf16.mxu0 0
        %1039 = vmatpush1.bf16.msra.mxu0 0
        %1040 = vmatprep.subr.bf16.mxu0 0
        %1041 = vmatpush1.bf16.msra.mxu0 0
        %1042 = vmatprep.subr.bf16.mxu0 0
        %1043 = vmatpush1.bf16.msra.mxu0 0
        %1044 = vmatprep.subr.bf16.mxu0 0
        %1045 = vmatpush1.bf16.msra.mxu0 0
        %1046 = vmatprep.mubr.bf16.mxu0 0
        %1047 = vmatmul.mubr.bf16.gmra.mrb[0].mxu0 %v1012
        %v1048 = vpop.f32.mrb[0].mxu0
        %v1049 = vadd.f32 %v998, %v1048
        %v1050 = vpop.f32.mrb[0].mxu0
        %v1051 = vpop.f32.mrb[0].mxu0
        %v1052 = vpop.f32.mrb[0].mxu0
        %1053 = vdwg.mxu0
        %v1054 = vadd.f32 %v1049, %v363
        %v1055 = vsel %vm390, %v1054, 0.0
        %1056 = vadd.xlane.f32.xlu0 %v1055
        %v1057 = vpop.xlane.xlu0 %1056
        %v1058 = vrcp.pop 32.0
        %v1059 = vmul.f32 %v1057, %v1058
        %v1060 = vsub.f32 %v1054, %v1059
        %v1061 = vmul.f32 %v1060, %v1060
        %v1062 = vsel %vm390, %v1061, 0.0
        %1063 = vadd.xlane.f32.xlu0 %v1062
        %v1064 = vpop.xlane.xlu0 %1063
        %v1065 = vmul.f32 %v1064, %v1058
        %v1066 = vadd.f32 %v1065, 1e-05
        %v1067 = vrsqrt.pop %v1066
        %v1068 = vmul.f32 %v1060, %v1067
        %v1069 = vld [vmem:[%s8 + $0x1] sm:$0x1]
        %v1070 = vlaneseq
        %v1071 = vshrl.u32 %v1070, 7
        %v1072 = vsub.s32 0, %v1071
        %v1073 = vrot.slane %v1069, %v1072
        %v1074 = vmul.f32 %v1068, %v1073
        %v1075 = vld [vmem:[%s8 + $0x2] sm:$0x1]
        %v1076 = vlaneseq
        %v1077 = vshrl.u32 %v1076, 7
        %v1078 = vsub.s32 0, %v1077
        %v1079 = vrot.slane %v1075, %v1078
        %v1080 = vadd.f32 %v1074, %v1079
        %1081 = vst.msk [vmem:[%s349] sm:$0xff] %vm390, %v1080
        %s1082 = sand.u32 %s235, 1
        %s1083 = scalar_lea.sflag [#allocation3], %s1082
        %s1084 = sand.u32 %s235, 1
        %s1085 = smul.addr %s1084, 8
        %s1086 = scalar_lea.vmem [#allocation2], %s1085
        // Predicated region
        $region57: #{look_back_forward.1} parent=55 // pred_check
          %p1087 = pneg %p245
        $region58: #{look_back_forward.1} parent=55 // pred_check_branch
          %1089 = sbr.rel (%p1087) target = $region60
        $region59: #{look_back_forward.1} parent=55 // pred_region
          %s1091 = ssub.s32 128, 128
          %1092 = vsyncadd %s1083, %s1091
          %s1093 = smul.addr %s23, 128
          %s1094 = scalar_lea.hbm %s9, %s1093
          %s1096 = sshll.u32 %s1086, 4
          %s1097 = int_to_ptr.vmem [resolvable:$true] %s1096
          %1099 = dma.vmem_to_hbm [thread:$0]  %s1097, 128, %s1094, %s1083
        $region60: #{look_back_forward.1} parent=55 // pred_fallthru
          _
      $region56: #{look_back_forward.1} parent=5 // pred_fallthru
        _
      %p1100 = scmp.le.s32.totalorder 2, %s18
      // Predicated region
      $region61: #{look_back_forward.1} parent=5 // pred_check
        %p1101 = pneg %p1100
      $region62: #{look_back_forward.1} parent=5 // pred_check_branch
        %1103 = sbr.rel (%p1101) target = $region64
      $region63: #{look_back_forward.1} parent=5 // pred_region
        %s1104 = ssub.s32 %s18, 2
        // Predicated region
        $region65: #{look_back_forward.1} parent=63 // pred_check
          %p1105 = pneg %p251
        $region66: #{look_back_forward.1} parent=63 // pred_check_branch
          %1107 = sbr.rel (%p1105) target = $region68
        $region67: #{look_back_forward.1} parent=63 // pred_region
          %s1108 = sand.u32 %s236, 1
          %s1109 = scalar_lea.sflag [#allocation3], %s1108
          %s1110 = sand.u32 %s236, 1
          %s1111 = smul.addr %s1110, 8
          %s1112 = scalar_lea.vmem [#allocation2], %s1111
          %1113 = dma.done %s1109, 128
        $region68: #{look_back_forward.1} parent=63 // pred_fallthru
          _
      $region64: #{look_back_forward.1} parent=5 // pred_fallthru
        _
    $region6: #{look_back_forward.1} parent=1 // loop_footer
      %s22 = sadd.s32 1, %s18
    $region7: #{look_back_forward.1} parent=1 // loop_footer_branch
      %17 = sbr.rel target = $region3
    $region8: #{look_back_forward.1} parent=1 // loop_exit
      _
    %1114 = vsyncpa [#allocation3], 1
    %s1115 = scalar_lea.sflag [#allocation3], 1
    %1116 = vsyncpa %s1115, 1

</llo_original>
